<compile_context>
chip_gen: v6e
topology: v6e:2x2x1
jax: 0.10.0
libtpu: 0.0.40
codegen_flags: <defaults>
</compile_context>

<pallas_src>
import functools
import math

import jax
import jax.numpy as jnp
from jax.experimental import pallas as pl
from jax.experimental.pallas import tpu as pltpu

BN_EPS = 1e-5


def _rup(x, m):
    return ((x + m - 1) // m) * m


def _choose_lane_tiling(B, seg, target_lanes=512):
    """Pick segments-per-block (whole segments only) and padded batch size."""
    m = 128 // math.gcd(seg, 128)          # segments needed for 128-lane alignment
    spb = m * max(1, round(target_lanes / (m * seg)))
    spb = min(spb, _rup(B, m))             # don't pad batch by more than (m-1) segs
    b_pad = _rup(B, spb)
    if b_pad > 2 * B:                      # alignment padding too costly:
        spb, b_pad = B, B                  # one block covering the full lane extent
    return spb, b_pad


def _dense_kernel(x_ref, *refs, seg_len, valid_len, cin_p, g_p, num_layers):
    """One grid step: (Cin_p, nblk) f32 slab -> (Ctot_p, nblk) f32 slab."""
    param_refs = refs[:2 * num_layers]
    o_ref = refs[2 * num_layers]

    n = o_ref.shape[1]

    # Input channels pass through unchanged (f32) and seed the in-place
    # channel accumulator (the output block itself).
    o_ref[0:cin_p, :] = x_ref[...]

    # Real-data lanes are positions 1..valid_len inside each seg_len-lane
    # segment; halo lanes must stay exactly zero so each layer's output can be
    # reused as a 'same'-padded conv input by the next layer.
    pos = jax.lax.broadcasted_iota(jnp.int32, (g_p, n), 1) % seg_len
    keep = jnp.logical_and(pos >= 1, pos <= valid_len)

    for i in range(num_layers):
        cin_i = cin_p + i * g_p
        w = param_refs[2 * i][...]                      # (3*G_p, cin_i) bf16
        t = param_refs[2 * i + 1][...]                  # (G_p, 1) f32 BN shift
        xin = o_ref[0:cin_i, :].astype(jnp.bfloat16)    # aligned slice, bf16 op
        # One MXU matmul per layer; taps are separated along the output rows.
        y = jnp.dot(w, xin, preferred_element_type=jnp.float32)   # (3*G_p, n)
        # h[:, p] = y0[:, p-1] + y1[:, p] + y2[:, p+1]   (rolls run on the XLU)
        pre = (pltpu.roll(y[0:g_p, :], 1, 1)
               + y[g_p:2 * g_p, :]
               + pltpu.roll(y[2 * g_p:3 * g_p, :], n - 1, 1)
               + t)
        # Fused ReLU + halo re-zeroing.
        h = jnp.where(jnp.logical_and(keep, pre > 0.0), pre, 0.0)
        o_ref[cin_p + i * g_p: cin_p + (i + 1) * g_p, :] = h


def dense_block(x, layer_params, *, growth_rate):
    """x: (B, Cin, L) f32 -> (B, Cin + num_layers*growth_rate, L) f32."""
    B, Cin, L = x.shape
    G = growth_rate
    num_layers = len(layer_params)
    seg = L + 2                                        # 1 halo lane each side
    Cin_p = _rup(Cin, 8)
    G_p = _rup(G, 8)
    Ctot_p = Cin_p + num_layers * G_p

    # ---- Host-side fold: eval-BN scale into conv weights, taps stacked along
    # the OUTPUT-channel axis, input-channel columns scattered into the
    # 8-aligned channel layout, weights cast to bf16. ------------------------
    folded = []
    for i, p in enumerate(layer_params):
        cin_pad = Cin_p + i * G_p
        s = p["gamma"] / jnp.sqrt(p["var"] + BN_EPS)             # (G,)
        wf = p["w"] * s[:, None, None]                           # (G, Cin+i*G, 3)
        t = (p["b"] - p["mean"]) * s + p["beta"]                 # (G,)
        w_big = jnp.zeros((3 * G_p, cin_pad), jnp.float32)
        for k in range(3):                                       # tap index
            wk = wf[:, :, k]                                     # (G, Cin+i*G)
            w_big = w_big.at[k * G_p:k * G_p + G, 0:Cin].set(wk[:, 0:Cin])
            for j in range(i):                                   # earlier layers
                dst = Cin_p + j * G_p
                src = Cin + j * G
                w_big = w_big.at[k * G_p:k * G_p + G,
                                 dst:dst + G].set(wk[:, src:src + G])
        t_p = jnp.zeros((G_p, 1), jnp.float32).at[0:G, 0].set(t)
        folded += [w_big.astype(jnp.bfloat16), t_p]

    # ---- Lane tiling: blocks of whole segments, ~512 lanes, 128-aligned. ----
    spb, B_pad = _choose_lane_tiling(B, seg)
    nblk = spb * seg
    n_blocks = B_pad // spb

    # (B, Cin, L) -> (Cin_p, B_pad*seg): zero batch/channel pad + halo lanes.
    xp = jnp.pad(x, ((0, B_pad - B), (0, Cin_p - Cin), (1, 1)))
    x2d = jnp.transpose(xp, (1, 0, 2)).reshape(Cin_p, B_pad * seg)

    kernel = functools.partial(
        _dense_kernel, seg_len=seg, valid_len=L,
        cin_p=Cin_p, g_p=G_p, num_layers=num_layers)

    in_specs = [pl.BlockSpec((Cin_p, nblk), lambda i: (0, i))]
    in_specs += [pl.BlockSpec(a.shape, lambda i: (0, 0)) for a in folded]
    out_spec = pl.BlockSpec((Ctot_p, nblk), lambda i: (0, i))

    n_tot = B_pad * seg
    flops = sum(2 * (3 * G_p) * (Cin_p + i * G_p) * n_tot
                for i in range(num_layers))
    bytes_accessed = (x2d.size * 4 + Ctot_p * n_tot * 4
                      + sum(int(a.size) * a.dtype.itemsize for a in folded))
    cost = pl.CostEstimate(flops=int(flops), transcendentals=0,
                           bytes_accessed=int(bytes_accessed))

    out2d = pl.pallas_call(
        kernel,
        out_shape=jax.ShapeDtypeStruct((Ctot_p, n_tot), jnp.float32),
        grid=(n_blocks,),
        in_specs=in_specs,
        out_specs=out_spec,
        compiler_params=pltpu.CompilerParams(
            dimension_semantics=("parallel",)),
        cost_estimate=cost,
    )(x2d, *folded)

    # (Ctot_p, B_pad*seg) -> (B, Ctot, L): drop halo lanes, padded batches and
    # padded channel rows, restore the batch axis.
    out3 = out2d.reshape(Ctot_p, B_pad, seg)[:, :B, 1:L + 1]
    rows = list(range(Cin)) + [Cin_p + i * G_p + j
                               for i in range(num_layers) for j in range(G)]
    if rows != list(range(Cin + num_layers * G)):
        out3 = jnp.take(out3, jnp.asarray(rows, jnp.int32), axis=0)
    return jnp.transpose(out3, (1, 0, 2))


def _ref_forward(x, layer_params):
    """Plain-JAX reference: Conv1d + eval-mode BN + ReLU, channel concat."""
    for p in layer_params:
        out = jax.lax.conv_general_dilated(
            x, p["w"], window_strides=(1,), padding=[(1, 1)],
            dimension_numbers=("NCH", "OIH", "NCH"))
        out = out + p["b"][None, :, None]
        s = p["gamma"] / jnp.sqrt(p["var"] + BN_EPS)
        out = (out - p["mean"][None, :, None]) * s[None, :, None] \
            + p["beta"][None, :, None]
        out = jnp.maximum(out, 0.0)
        x = jnp.concatenate([x, out], axis=1)
    return x


def make_params(key, in_channels, num_layers, growth_rate):
    layers = []
    for i in range(num_layers):
        cin = in_channels + i * growth_rate
        key, k1, k2, k3, k4, k5, k6 = jax.random.split(key, 7)
        w = jax.random.normal(k1, (growth_rate, cin, 3), jnp.float32)
        w = w / jnp.sqrt(jnp.float32(cin * 3))
        layers.append(dict(
            w=w,
            b=0.1 * jax.random.normal(k2, (growth_rate,), jnp.float32),
            gamma=1.0 + 0.1 * jax.random.normal(k3, (growth_rate,), jnp.float32),
            beta=0.1 * jax.random.normal(k4, (growth_rate,), jnp.float32),
            mean=0.1 * jax.random.normal(k5, (growth_rate,), jnp.float32),
            var=1.0 + 0.1 * jnp.abs(
                jax.random.normal(k6, (growth_rate,), jnp.float32)),
        ))
    return layers


if __name__ == "__main__":
    B, Cin, L = 32, 4, 30           # seg = 32 -> 2 blocks of 16 segs = 512 lanes
    num_layers, growth = 3, 8       # output channels = 4 + 3*8 = 28
    root = jax.random.PRNGKey(0)
    k_x, k_p = jax.random.split(root)
    x = jax.random.normal(k_x, (B, Cin, L), jnp.float32)
    params = make_params(k_p, Cin, num_layers, growth)

    fwd = jax.jit(functools.partial(dense_block, growth_rate=growth))
    out = jax.block_until_ready(fwd(x, params))

    assert out.shape == (B, Cin + num_layers * growth, L), out.shape
    ref = _ref_forward(x, params)
    # bf16 matmul operands (f32 accumulate): tolerance loosened vs f32 reference.
    if not bool(jnp.allclose(out, ref, rtol=5e-2, atol=5e-2)):
        err = float(jnp.max(jnp.abs(out - ref)))
        raise AssertionError(
            f"Pallas kernel does not match JAX reference (max abs err {err})")

    print("KERNEL_OK")
</pallas_src>

<mosaic_0001>
module attributes {stable_mosaic.version = 11 : i64} {
  func.func @_dense_kernel(%arg0: i32, %arg1: memref<8x512xf32, #tpu.memory_space<vmem>>, %arg2: memref<24x8xbf16, #tpu.memory_space<vmem>>, %arg3: memref<8x1xf32, #tpu.memory_space<vmem>>, %arg4: memref<24x16xbf16, #tpu.memory_space<vmem>>, %arg5: memref<8x1xf32, #tpu.memory_space<vmem>>, %arg6: memref<24x24xbf16, #tpu.memory_space<vmem>>, %arg7: memref<8x1xf32, #tpu.memory_space<vmem>>, %arg8: memref<32x512xf32, #tpu.memory_space<vmem>>) attributes {dimension_semantics = [#tpu.dimension_semantics<parallel>], iteration_bounds = array<i64: 2>, scalar_prefetch = 0 : i64, scratch_operands = 0 : i64, tpu.core_type = #tpu.core_type<tc>, window_params = [{transform_indices = @transform_0, window_bounds = array<i64: 8, 512>}, {pipeline_mode = #tpu.pipeline_mode<synchronous>, transform_indices = @transform_1, window_bounds = array<i64: 24, 8>}, {pipeline_mode = #tpu.pipeline_mode<synchronous>, transform_indices = @transform_2, window_bounds = array<i64: 8, 1>}, {pipeline_mode = #tpu.pipeline_mode<synchronous>, transform_indices = @transform_3, window_bounds = array<i64: 24, 16>}, {pipeline_mode = #tpu.pipeline_mode<synchronous>, transform_indices = @transform_4, window_bounds = array<i64: 8, 1>}, {pipeline_mode = #tpu.pipeline_mode<synchronous>, transform_indices = @transform_5, window_bounds = array<i64: 24, 24>}, {pipeline_mode = #tpu.pipeline_mode<synchronous>, transform_indices = @transform_6, window_bounds = array<i64: 8, 1>}, {transform_indices = @transform_7, window_bounds = array<i64: 32, 512>}]} {
    %c0 = arith.constant 0 : index
    %c0_0 = arith.constant 0 : index
    %0 = vector.load %arg1[%c0, %c0_0] : memref<8x512xf32, #tpu.memory_space<vmem>>, vector<8x512xf32>
    %c0_1 = arith.constant 0 : index
    %c0_2 = arith.constant 0 : index
    %1 = vector.load %arg8[%c0_1, %c0_2] : memref<32x512xf32, #tpu.memory_space<vmem>>, vector<8x512xf32>
    tpu.vector_store %arg8[%c0_1, %c0_2], %0 {strides = array<i32>} : memref<32x512xf32, #tpu.memory_space<vmem>>, vector<8x512xf32>,
    %2 = tpu.iota {dimensions = array<i32: 1>} : vector<8x512xi32>
    %c32_i32 = arith.constant 32 : i32
    %c0_i32 = arith.constant 0 : i32
    %3 = arith.cmpi eq, %c32_i32, %c0_i32 : i32
    %c1_i32 = arith.constant 1 : i32
    %4 = arith.select %3, %c1_i32, %c32_i32 : i32
    %5 = vector.broadcast %4 : i32 to vector<8x512xi32>
    %6 = arith.remsi %2, %5 : vector<8x512xi32>
    %c0_i32_3 = arith.constant 0 : i32
    %7 = vector.broadcast %c0_i32_3 : i32 to vector<8x512xi32>
    %8 = arith.cmpi ne, %6, %7 : vector<8x512xi32>
    %c0_i32_4 = arith.constant 0 : i32
    %9 = vector.broadcast %c0_i32_4 : i32 to vector<8x512xi32>
    %10 = arith.cmpi slt, %6, %9 : vector<8x512xi32>
    %c0_i32_5 = arith.constant 0 : i32
    %11 = arith.cmpi slt, %4, %c0_i32_5 : i32
    %12 = vector.broadcast %11 : i1 to vector<8x512xi1>
    %13 = vector.broadcast %12 : vector<8x512xi1> to vector<8x512xi1>
    %14 = arith.xori %10, %13 : vector<8x512xi1>
    %15 = arith.andi %14, %8 : vector<8x512xi1>
    %16 = vector.broadcast %4 : i32 to vector<8x512xi32>
    %17 = arith.addi %6, %16 : vector<8x512xi32>
    %18 = arith.select %15, %17, %6 : vector<8x512xi1>, vector<8x512xi32>
    %c1_i32_6 = arith.constant 1 : i32
    %19 = vector.broadcast %c1_i32_6 : i32 to vector<8x512xi32>
    %20 = arith.cmpi sge, %18, %19 : vector<8x512xi32>
    %c30_i32 = arith.constant 30 : i32
    %21 = vector.broadcast %c30_i32 : i32 to vector<8x512xi32>
    %22 = arith.cmpi sle, %18, %21 : vector<8x512xi32>
    %23 = arith.andi %20, %22 : vector<8x512xi1>
    %c0_7 = arith.constant 0 : index
    %c0_8 = arith.constant 0 : index
    %24 = vector.load %arg2[%c0_7, %c0_8] : memref<24x8xbf16, #tpu.memory_space<vmem>>, vector<24x8xbf16>
    %c0_9 = arith.constant 0 : index
    %c0_10 = arith.constant 0 : index
    %25 = vector.load %arg3[%c0_9, %c0_10] : memref<8x1xf32, #tpu.memory_space<vmem>>, vector<8x1xf32>
    %c0_11 = arith.constant 0 : index
    %c0_12 = arith.constant 0 : index
    %26 = vector.load %arg8[%c0_11, %c0_12] : memref<32x512xf32, #tpu.memory_space<vmem>>, vector<8x512xf32>
    %27 = arith.truncf %26 : vector<8x512xf32> to vector<8x512xbf16>
    %cst = arith.constant dense<0.000000e+00> : vector<24x512xf32>
    %28 = tpu.matmul %24, %27, %cst {dimension_numbers = #tpu.dot_dimension_numbers<[1], [0], [0], [1], [0, 0, 1, 1], [], []>} : vector<24x8xbf16>, vector<8x512xbf16>, vector<24x512xf32> -> vector<24x512xf32>
    %29 = vector.extract_strided_slice %28 {offsets = [0, 0], sizes = [8, 512], strides = [1, 1]} : vector<24x512xf32> to vector<8x512xf32>
    %c1_i32_13 = arith.constant 1 : i32
    %30 = tpu.dynamic_rotate %29 by %c1_i32_13 dim 1 : vector<8x512xf32>, i32 -> vector<8x512xf32>
    %31 = vector.extract_strided_slice %28 {offsets = [8, 0], sizes = [8, 512], strides = [1, 1]} : vector<24x512xf32> to vector<8x512xf32>
    %32 = arith.addf %30, %31 : vector<8x512xf32>
    %33 = vector.extract_strided_slice %28 {offsets = [16, 0], sizes = [8, 512], strides = [1, 1]} : vector<24x512xf32> to vector<8x512xf32>
    %c511_i32 = arith.constant 511 : i32
    %34 = tpu.dynamic_rotate %33 by %c511_i32 dim 1 : vector<8x512xf32>, i32 -> vector<8x512xf32>
    %35 = arith.addf %32, %34 : vector<8x512xf32>
    %36 = vector.broadcast %25 : vector<8x1xf32> to vector<8x512xf32>
    %37 = arith.addf %35, %36 : vector<8x512xf32>
    %cst_14 = arith.constant 0.000000e+00 : f32
    %38 = vector.broadcast %cst_14 : f32 to vector<8x512xf32>
    %39 = arith.cmpf ogt, %37, %38 : vector<8x512xf32>
    %40 = arith.andi %23, %39 : vector<8x512xi1>
    %cst_15 = arith.constant 0.000000e+00 : f32
    %41 = vector.broadcast %cst_15 : f32 to vector<8x512xf32>
    %42 = arith.select %40, %37, %41 : vector<8x512xi1>, vector<8x512xf32>
    %c8 = arith.constant 8 : index
    %c0_16 = arith.constant 0 : index
    %43 = vector.load %arg8[%c8, %c0_16] : memref<32x512xf32, #tpu.memory_space<vmem>>, vector<8x512xf32>
    tpu.vector_store %arg8[%c8, %c0_16], %42 {strides = array<i32>} : memref<32x512xf32, #tpu.memory_space<vmem>>, vector<8x512xf32>,
    %c0_17 = arith.constant 0 : index
    %c0_18 = arith.constant 0 : index
    %44 = vector.load %arg4[%c0_17, %c0_18] : memref<24x16xbf16, #tpu.memory_space<vmem>>, vector<24x16xbf16>
    %c0_19 = arith.constant 0 : index
    %c0_20 = arith.constant 0 : index
    %45 = vector.load %arg5[%c0_19, %c0_20] : memref<8x1xf32, #tpu.memory_space<vmem>>, vector<8x1xf32>
    %c0_21 = arith.constant 0 : index
    %c0_22 = arith.constant 0 : index
    %46 = vector.load %arg8[%c0_21, %c0_22] : memref<32x512xf32, #tpu.memory_space<vmem>>, vector<16x512xf32>
    %47 = arith.truncf %46 : vector<16x512xf32> to vector<16x512xbf16>
    %cst_23 = arith.constant dense<0.000000e+00> : vector<24x512xf32>
    %48 = tpu.matmul %44, %47, %cst_23 {dimension_numbers = #tpu.dot_dimension_numbers<[1], [0], [0], [1], [0, 0, 1, 1], [], []>} : vector<24x16xbf16>, vector<16x512xbf16>, vector<24x512xf32> -> vector<24x512xf32>
    %49 = vector.extract_strided_slice %48 {offsets = [0, 0], sizes = [8, 512], strides = [1, 1]} : vector<24x512xf32> to vector<8x512xf32>
    %c1_i32_24 = arith.constant 1 : i32
    %50 = tpu.dynamic_rotate %49 by %c1_i32_24 dim 1 : vector<8x512xf32>, i32 -> vector<8x512xf32>
    %51 = vector.extract_strided_slice %48 {offsets = [8, 0], sizes = [8, 512], strides = [1, 1]} : vector<24x512xf32> to vector<8x512xf32>
    %52 = arith.addf %50, %51 : vector<8x512xf32>
    %53 = vector.extract_strided_slice %48 {offsets = [16, 0], sizes = [8, 512], strides = [1, 1]} : vector<24x512xf32> to vector<8x512xf32>
    %c511_i32_25 = arith.constant 511 : i32
    %54 = tpu.dynamic_rotate %53 by %c511_i32_25 dim 1 : vector<8x512xf32>, i32 -> vector<8x512xf32>
    %55 = arith.addf %52, %54 : vector<8x512xf32>
    %56 = vector.broadcast %45 : vector<8x1xf32> to vector<8x512xf32>
    %57 = arith.addf %55, %56 : vector<8x512xf32>
    %cst_26 = arith.constant 0.000000e+00 : f32
    %58 = vector.broadcast %cst_26 : f32 to vector<8x512xf32>
    %59 = arith.cmpf ogt, %57, %58 : vector<8x512xf32>
    %60 = arith.andi %23, %59 : vector<8x512xi1>
    %cst_27 = arith.constant 0.000000e+00 : f32
    %61 = vector.broadcast %cst_27 : f32 to vector<8x512xf32>
    %62 = arith.select %60, %57, %61 : vector<8x512xi1>, vector<8x512xf32>
    %c16 = arith.constant 16 : index
    %c0_28 = arith.constant 0 : index
    %63 = vector.load %arg8[%c16, %c0_28] : memref<32x512xf32, #tpu.memory_space<vmem>>, vector<8x512xf32>
    tpu.vector_store %arg8[%c16, %c0_28], %62 {strides = array<i32>} : memref<32x512xf32, #tpu.memory_space<vmem>>, vector<8x512xf32>,
    %c0_29 = arith.constant 0 : index
    %c0_30 = arith.constant 0 : index
    %64 = vector.load %arg6[%c0_29, %c0_30] : memref<24x24xbf16, #tpu.memory_space<vmem>>, vector<24x24xbf16>
    %c0_31 = arith.constant 0 : index
    %c0_32 = arith.constant 0 : index
    %65 = vector.load %arg7[%c0_31, %c0_32] : memref<8x1xf32, #tpu.memory_space<vmem>>, vector<8x1xf32>
    %c0_33 = arith.constant 0 : index
    %c0_34 = arith.constant 0 : index
    %66 = vector.load %arg8[%c0_33, %c0_34] : memref<32x512xf32, #tpu.memory_space<vmem>>, vector<24x512xf32>
    %67 = arith.truncf %66 : vector<24x512xf32> to vector<24x512xbf16>
    %cst_35 = arith.constant dense<0.000000e+00> : vector<24x512xf32>
    %68 = tpu.matmul %64, %67, %cst_35 {dimension_numbers = #tpu.dot_dimension_numbers<[1], [0], [0], [1], [0, 0, 1, 1], [], []>} : vector<24x24xbf16>, vector<24x512xbf16>, vector<24x512xf32> -> vector<24x512xf32>
    %69 = vector.extract_strided_slice %68 {offsets = [0, 0], sizes = [8, 512], strides = [1, 1]} : vector<24x512xf32> to vector<8x512xf32>
    %c1_i32_36 = arith.constant 1 : i32
    %70 = tpu.dynamic_rotate %69 by %c1_i32_36 dim 1 : vector<8x512xf32>, i32 -> vector<8x512xf32>
    %71 = vector.extract_strided_slice %68 {offsets = [8, 0], sizes = [8, 512], strides = [1, 1]} : vector<24x512xf32> to vector<8x512xf32>
    %72 = arith.addf %70, %71 : vector<8x512xf32>
    %73 = vector.extract_strided_slice %68 {offsets = [16, 0], sizes = [8, 512], strides = [1, 1]} : vector<24x512xf32> to vector<8x512xf32>
    %c511_i32_37 = arith.constant 511 : i32
    %74 = tpu.dynamic_rotate %73 by %c511_i32_37 dim 1 : vector<8x512xf32>, i32 -> vector<8x512xf32>
    %75 = arith.addf %72, %74 : vector<8x512xf32>
    %76 = vector.broadcast %65 : vector<8x1xf32> to vector<8x512xf32>
    %77 = arith.addf %75, %76 : vector<8x512xf32>
    %cst_38 = arith.constant 0.000000e+00 : f32
    %78 = vector.broadcast %cst_38 : f32 to vector<8x512xf32>
    %79 = arith.cmpf ogt, %77, %78 : vector<8x512xf32>
    %80 = arith.andi %23, %79 : vector<8x512xi1>
    %cst_39 = arith.constant 0.000000e+00 : f32
    %81 = vector.broadcast %cst_39 : f32 to vector<8x512xf32>
    %82 = arith.select %80, %77, %81 : vector<8x512xi1>, vector<8x512xf32>
    %c24 = arith.constant 24 : index
    %c0_40 = arith.constant 0 : index
    %83 = vector.load %arg8[%c24, %c0_40] : memref<32x512xf32, #tpu.memory_space<vmem>>, vector<8x512xf32>
    tpu.vector_store %arg8[%c24, %c0_40], %82 {strides = array<i32>} : memref<32x512xf32, #tpu.memory_space<vmem>>, vector<8x512xf32>,
    return
  }
  func.func @transform_0(%arg0: i32) -> (i32, i32) {
    %c0_i32 = arith.constant 0 : i32
    %c0_i32_0 = arith.constant 0 : i32
    return %c0_i32, %arg0 : i32, i32
  }
  func.func @transform_1(%arg0: i32) -> (i32, i32) {
    %c0_i32 = arith.constant 0 : i32
    %c0_i32_0 = arith.constant 0 : i32
    %c0_i32_1 = arith.constant 0 : i32
    return %c0_i32, %c0_i32_0 : i32, i32
  }
  func.func @transform_2(%arg0: i32) -> (i32, i32) {
    %c0_i32 = arith.constant 0 : i32
    %c0_i32_0 = arith.constant 0 : i32
    %c0_i32_1 = arith.constant 0 : i32
    return %c0_i32, %c0_i32_0 : i32, i32
  }
  func.func @transform_3(%arg0: i32) -> (i32, i32) {
    %c0_i32 = arith.constant 0 : i32
    %c0_i32_0 = arith.constant 0 : i32
    %c0_i32_1 = arith.constant 0 : i32
    return %c0_i32, %c0_i32_0 : i32, i32
  }
  func.func @transform_4(%arg0: i32) -> (i32, i32) {
    %c0_i32 = arith.constant 0 : i32
    %c0_i32_0 = arith.constant 0 : i32
    %c0_i32_1 = arith.constant 0 : i32
    return %c0_i32, %c0_i32_0 : i32, i32
  }
  func.func @transform_5(%arg0: i32) -> (i32, i32) {
    %c0_i32 = arith.constant 0 : i32
    %c0_i32_0 = arith.constant 0 : i32
    %c0_i32_1 = arith.constant 0 : i32
    return %c0_i32, %c0_i32_0 : i32, i32
  }
  func.func @transform_6(%arg0: i32) -> (i32, i32) {
    %c0_i32 = arith.constant 0 : i32
    %c0_i32_0 = arith.constant 0 : i32
    %c0_i32_1 = arith.constant 0 : i32
    return %c0_i32, %c0_i32_0 : i32, i32
  }
  func.func @transform_7(%arg0: i32) -> (i32, i32) {
    %c0_i32 = arith.constant 0 : i32
    %c0_i32_0 = arith.constant 0 : i32
    return %c0_i32, %arg0 : i32, i32
  }
}

</mosaic_0001>

<llo_original>
// kernel: dense_block.1
$region0: #{dense_block.1}
  #allocation0 [shape = 'u32[]', space=smem, size = 0x4, offset = 0x4, fixed_abs, tag = 'smem constant byte address 0x4 - core index']
  #allocation1 [shape = 'u32[144,128]{1,0:T(1,128)}', space=vmem, size = 0x12000, scoped, tag = 'internal scratch']
  %s0 = inlined_call_operand.vmem [shape: f32[8,1024], index: 0, kind: input, shape index: {}]
  %s1 = inlined_call_operand.vmem [shape: bf16[24,8], index: 1, kind: input, shape index: {}]
  %s2 = inlined_call_operand.vmem [shape: f32[8,1], index: 2, kind: input, shape index: {}]
  %s3 = inlined_call_operand.vmem [shape: bf16[24,16], index: 3, kind: input, shape index: {}]
  %s4 = inlined_call_operand.vmem [shape: f32[8,1], index: 4, kind: input, shape index: {}]
  %s5 = inlined_call_operand.vmem [shape: bf16[24,24], index: 5, kind: input, shape index: {}]
  %s6 = inlined_call_operand.vmem [shape: f32[8,1], index: 6, kind: input, shape index: {}]
  %s7 = inlined_call_operand.vmem [shape: f32[32,1024], index: 7, kind: output, shape index: {}]
  %s8 = sld [smem:[#allocation0]]
  $region80: #{dense_block.1} parent=0
    _
  %s10 = ssub.s32 1, %s8
  %s11 = scalar_select 0, %s10, %s8
  $region1: #{dense_block.1} parent=0
    #allocation2 [shape = 'u8[131072]{0}', space=vmem, size = 0x20000, scoped, tag = 'output window, operand 0']
    loop: start=0, step=1, limit=4
    $region2: #{dense_block.1} parent=1 // loop_pre_header
      _
    $region3: #{dense_block.1} parent=1 // loop_header
      %s13 = sphi 0, %s17
      %p14 = scmp.ge.s32.totalorder %s13, 4
      %s23 = sphi 0, %s25
      %s26 = sphi 0, %s23
      %s27 = sphi 0, %s26
      %s43 = sphi 0, %s27
      %s47 = sphi 0, %s47
      %s49 = sphi 0, %s47
      %s50 = sphi 0, %s49
      %s64 = sphi 0, %s50
      %s68 = sphi 0, %s68
      %s70 = sphi 0, %s68
      %s71 = sphi 0, %s70
      %s85 = sphi 0, %s71
      %s89 = sphi 0, %s89
      %s91 = sphi 0, %s89
      %s92 = sphi 0, %s91
      %s106 = sphi 0, %s92
      %s110 = sphi 0, %s110
      %s112 = sphi 0, %s110
      %s113 = sphi 0, %s112
      %s127 = sphi 0, %s113
      %s131 = sphi 0, %s131
      %s133 = sphi 0, %s131
      %s134 = sphi 0, %s133
      %s148 = sphi 0, %s134
      %s152 = sphi 0, %s152
      %s154 = sphi 0, %s152
      %s155 = sphi 0, %s154
      %s169 = sphi 0, %s155
      %s175 = sphi 0, %s177
      %s178 = sphi 0, %s175
      %s179 = sphi 0, %s178
      %s195 = sphi 0, %s179
    $region4: #{dense_block.1} parent=1 // loop_header_branch
      %16 = sbr.rel (%p14) target = $region8
    $region5: #{dense_block.1} parent=1 // loop_body
      %s18 = ssub.s32 %s13, 1
      %s19 = ssub.s32 %s13, 2
      %s20 = sadd.s32 %s13, 1
      %s21 = ssub.s32 %s13, %s20
      %p22 = scmp.eq.s32.totalorder %s21, 0
      %s24 = sadd.s32 %s23, 1
      %s25 = scalar_select %p22, %s23, %s24
      %p28 = pneg %p22
      %p29 = scmp.eq.s32.totalorder %s13, 1
      %p30 = por %p28, %p29
      %p31 = scmp.ne.s32.totalorder %s23, %s26
      %p32 = scmp.eq.s32.totalorder %s13, 0
      %p33 = por %p31, %p32
      %p34 = scmp.ne.s32.totalorder %s23, %s26
      %p35 = scmp.eq.s32.totalorder %s18, 1
      %p36 = por %p34, %p35
      %p37 = scmp.ne.s32.totalorder %s26, %s27
      %p38 = scmp.eq.s32.totalorder %s18, 0
      %p39 = por %p37, %p38
      %p40 = scmp.ne.s32.totalorder %s26, %s27
      %p41 = scmp.eq.s32.totalorder %s19, 1
      %p42 = por %p40, %p41
      %p44 = scmp.ne.s32.totalorder %s27, %s43
      %p45 = scmp.eq.s32.totalorder %s19, 0
      %p46 = por %p44, %p45
      %s48 = sadd.s32 %s47, 1
      %p51 = scmp.eq.s32.totalorder %s13, 1
      %p52 = scmp.ne.s32.totalorder %s47, %s49
      %p53 = scmp.eq.s32.totalorder %s13, 0
      %p54 = por %p52, %p53
      %p55 = scmp.ne.s32.totalorder %s47, %s49
      %p56 = scmp.eq.s32.totalorder %s18, 1
      %p57 = por %p55, %p56
      %p58 = scmp.ne.s32.totalorder %s49, %s50
      %p59 = scmp.eq.s32.totalorder %s18, 0
      %p60 = por %p58, %p59
      %p61 = scmp.ne.s32.totalorder %s49, %s50
      %p62 = scmp.eq.s32.totalorder %s19, 1
      %p63 = por %p61, %p62
      %p65 = scmp.ne.s32.totalorder %s50, %s64
      %p66 = scmp.eq.s32.totalorder %s19, 0
      %p67 = por %p65, %p66
      %s69 = sadd.s32 %s68, 1
      %p72 = scmp.eq.s32.totalorder %s13, 1
      %p73 = scmp.ne.s32.totalorder %s68, %s70
      %p74 = scmp.eq.s32.totalorder %s13, 0
      %p75 = por %p73, %p74
      %p76 = scmp.ne.s32.totalorder %s68, %s70
      %p77 = scmp.eq.s32.totalorder %s18, 1
      %p78 = por %p76, %p77
      %p79 = scmp.ne.s32.totalorder %s70, %s71
      %p80 = scmp.eq.s32.totalorder %s18, 0
      %p81 = por %p79, %p80
      %p82 = scmp.ne.s32.totalorder %s70, %s71
      %p83 = scmp.eq.s32.totalorder %s19, 1
      %p84 = por %p82, %p83
      %p86 = scmp.ne.s32.totalorder %s71, %s85
      %p87 = scmp.eq.s32.totalorder %s19, 0
      %p88 = por %p86, %p87
      %s90 = sadd.s32 %s89, 1
      %p93 = scmp.eq.s32.totalorder %s13, 1
      %p94 = scmp.ne.s32.totalorder %s89, %s91
      %p95 = scmp.eq.s32.totalorder %s13, 0
      %p96 = por %p94, %p95
      %p97 = scmp.ne.s32.totalorder %s89, %s91
      %p98 = scmp.eq.s32.totalorder %s18, 1
      %p99 = por %p97, %p98
      %p100 = scmp.ne.s32.totalorder %s91, %s92
      %p101 = scmp.eq.s32.totalorder %s18, 0
      %p102 = por %p100, %p101
      %p103 = scmp.ne.s32.totalorder %s91, %s92
      %p104 = scmp.eq.s32.totalorder %s19, 1
      %p105 = por %p103, %p104
      %p107 = scmp.ne.s32.totalorder %s92, %s106
      %p108 = scmp.eq.s32.totalorder %s19, 0
      %p109 = por %p107, %p108
      %s111 = sadd.s32 %s110, 1
      %p114 = scmp.eq.s32.totalorder %s13, 1
      %p115 = scmp.ne.s32.totalorder %s110, %s112
      %p116 = scmp.eq.s32.totalorder %s13, 0
      %p117 = por %p115, %p116
      %p118 = scmp.ne.s32.totalorder %s110, %s112
      %p119 = scmp.eq.s32.totalorder %s18, 1
      %p120 = por %p118, %p119
      %p121 = scmp.ne.s32.totalorder %s112, %s113
      %p122 = scmp.eq.s32.totalorder %s18, 0
      %p123 = por %p121, %p122
      %p124 = scmp.ne.s32.totalorder %s112, %s113
      %p125 = scmp.eq.s32.totalorder %s19, 1
      %p126 = por %p124, %p125
      %p128 = scmp.ne.s32.totalorder %s113, %s127
      %p129 = scmp.eq.s32.totalorder %s19, 0
      %p130 = por %p128, %p129
      %s132 = sadd.s32 %s131, 1
      %p135 = scmp.eq.s32.totalorder %s13, 1
      %p136 = scmp.ne.s32.totalorder %s131, %s133
      %p137 = scmp.eq.s32.totalorder %s13, 0
      %p138 = por %p136, %p137
      %p139 = scmp.ne.s32.totalorder %s131, %s133
      %p140 = scmp.eq.s32.totalorder %s18, 1
      %p141 = por %p139, %p140
      %p142 = scmp.ne.s32.totalorder %s133, %s134
      %p143 = scmp.eq.s32.totalorder %s18, 0
      %p144 = por %p142, %p143
      %p145 = scmp.ne.s32.totalorder %s133, %s134
      %p146 = scmp.eq.s32.totalorder %s19, 1
      %p147 = por %p145, %p146
      %p149 = scmp.ne.s32.totalorder %s134, %s148
      %p150 = scmp.eq.s32.totalorder %s19, 0
      %p151 = por %p149, %p150
      %s153 = sadd.s32 %s152, 1
      %p156 = scmp.eq.s32.totalorder %s13, 1
      %p157 = scmp.ne.s32.totalorder %s152, %s154
      %p158 = scmp.eq.s32.totalorder %s13, 0
      %p159 = por %p157, %p158
      %p160 = scmp.ne.s32.totalorder %s152, %s154
      %p161 = scmp.eq.s32.totalorder %s18, 1
      %p162 = por %p160, %p161
      %p163 = scmp.ne.s32.totalorder %s154, %s155
      %p164 = scmp.eq.s32.totalorder %s18, 0
      %p165 = por %p163, %p164
      %p166 = scmp.ne.s32.totalorder %s154, %s155
      %p167 = scmp.eq.s32.totalorder %s19, 1
      %p168 = por %p166, %p167
      %p170 = scmp.ne.s32.totalorder %s155, %s169
      %p171 = scmp.eq.s32.totalorder %s19, 0
      %p172 = por %p170, %p171
      %s173 = ssub.s32 %s13, %s20
      %p174 = scmp.eq.s32.totalorder %s173, 0
      %s176 = sadd.s32 %s175, 1
      %s177 = scalar_select %p174, %s175, %s176
      %p180 = pneg %p174
      %p181 = scmp.eq.s32.totalorder %s13, 1
      %p182 = por %p180, %p181
      %p183 = scmp.ne.s32.totalorder %s175, %s178
      %p184 = scmp.eq.s32.totalorder %s13, 0
      %p185 = por %p183, %p184
      %p186 = scmp.ne.s32.totalorder %s175, %s178
      %p187 = scmp.eq.s32.totalorder %s18, 1
      %p188 = por %p186, %p187
      %p189 = scmp.ne.s32.totalorder %s178, %s179
      %p190 = scmp.eq.s32.totalorder %s18, 0
      %p191 = por %p189, %p190
      %p192 = scmp.ne.s32.totalorder %s178, %s179
      %p193 = scmp.eq.s32.totalorder %s19, 1
      %p194 = por %p192, %p193
      %p196 = scmp.ne.s32.totalorder %s179, %s195
      %p197 = scmp.eq.s32.totalorder %s19, 0
      %p198 = por %p196, %p197
      %p199 = scmp.le.s32.totalorder 1, %s13
      %p200 = scmp.lt.s32.totalorder %s13, 3
      %p201 = pnand %p199, %p200
      %p202 = pneg %p201
      // Predicated region
      $region9: #{dense_block.1} parent=5 // pred_check
        _
      $region10: #{dense_block.1} parent=5 // pred_check_branch
        %204 = sbr.rel (%p201) target = $region12
      $region11: #{dense_block.1} parent=5 // pred_region
        %s205 = ssub.s32 %s13, 1
        // Predicated region
        $region13: #{dense_block.1} parent=11 // pred_check
          %p206 = pneg %p60
        $region14: #{dense_block.1} parent=11 // pred_check_branch
          %208 = sbr.rel (%p206) target = $region16
        $region15: #{dense_block.1} parent=11 // pred_region
          _
        $region16: #{dense_block.1} parent=11 // pred_fallthru
          _
        // Predicated region
        $region17: #{dense_block.1} parent=11 // pred_check
          %p209 = pneg %p81
        $region18: #{dense_block.1} parent=11 // pred_check_branch
          %211 = sbr.rel (%p209) target = $region20
        $region19: #{dense_block.1} parent=11 // pred_region
          _
        $region20: #{dense_block.1} parent=11 // pred_fallthru
          _
        // Predicated region
        $region21: #{dense_block.1} parent=11 // pred_check
          %p212 = pneg %p102
        $region22: #{dense_block.1} parent=11 // pred_check_branch
          %214 = sbr.rel (%p212) target = $region24
        $region23: #{dense_block.1} parent=11 // pred_region
          _
        $region24: #{dense_block.1} parent=11 // pred_fallthru
          _
        // Predicated region
        $region25: #{dense_block.1} parent=11 // pred_check
          %p215 = pneg %p123
        $region26: #{dense_block.1} parent=11 // pred_check_branch
          %217 = sbr.rel (%p215) target = $region28
        $region27: #{dense_block.1} parent=11 // pred_region
          _
        $region28: #{dense_block.1} parent=11 // pred_fallthru
          _
        // Predicated region
        $region29: #{dense_block.1} parent=11 // pred_check
          %p218 = pneg %p144
        $region30: #{dense_block.1} parent=11 // pred_check_branch
          %220 = sbr.rel (%p218) target = $region32
        $region31: #{dense_block.1} parent=11 // pred_region
          _
        $region32: #{dense_block.1} parent=11 // pred_fallthru
          _
        // Predicated region
        $region33: #{dense_block.1} parent=11 // pred_check
          %p221 = pneg %p165
        $region34: #{dense_block.1} parent=11 // pred_check_branch
          %223 = sbr.rel (%p221) target = $region36
        $region35: #{dense_block.1} parent=11 // pred_region
          _
        $region36: #{dense_block.1} parent=11 // pred_fallthru
          _
      $region12: #{dense_block.1} parent=5 // pred_fallthru
        _
      %p224 = scmp.lt.s32.totalorder %s13, 2
      // Predicated region
      $region37: #{dense_block.1} parent=5 // pred_check
        %p225 = pneg %p224
      $region38: #{dense_block.1} parent=5 // pred_check_branch
        %227 = sbr.rel (%p225) target = $region40
      $region39: #{dense_block.1} parent=5 // pred_region
        // Predicated region
        $region41: #{dense_block.1} parent=39 // pred_check
          %p228 = pneg %p33
        $region42: #{dense_block.1} parent=39 // pred_check_branch
          %230 = sbr.rel (%p228) target = $region44
        $region43: #{dense_block.1} parent=39 // pred_region
          %s231 = smul.u32 4, %s13
          %p232 = scmp.lt.s32.totalorder %s231, 7
          %s233 = scalar_select %p232, %s231, 7
          %s234 = smul.addr %s233, 8
          %s235 = scalar_lea.vmem %s0, %s234
          %s236 = smul.u32 4, %s13
        $region44: #{dense_block.1} parent=39 // pred_fallthru
          _
      $region40: #{dense_block.1} parent=5 // pred_fallthru
        _
      %p237 = scmp.le.s32.totalorder 1, %s13
      %p238 = scmp.lt.s32.totalorder %s13, 3
      %p239 = pnand %p237, %p238
      %p240 = pneg %p239
      // Predicated region
      $region45: #{dense_block.1} parent=5 // pred_check
        _
      $region46: #{dense_block.1} parent=5 // pred_check_branch
        %242 = sbr.rel (%p239) target = $region48
      $region47: #{dense_block.1} parent=5 // pred_region
        %s243 = ssub.s32 %s13, 1
        %s244 = smul.u32 4, %s18
        %p245 = scmp.lt.s32.totalorder %s244, 7
        %s246 = scalar_select %p245, %s244, 7
        %s247 = smul.addr %s246, 8
        %s248 = scalar_lea.vmem %s0, %s247
        %p249 = pneg %p39
        %p250 = pneg %p36
        %p251 = pneg %p60
        %p252 = pneg %p57
        %p253 = pneg %p81
        %p254 = pneg %p78
        %p255 = pneg %p102
        %p256 = pneg %p99
        %p257 = pneg %p123
        %p258 = pneg %p120
        %p259 = pneg %p144
        %p260 = pneg %p141
        %p261 = pneg %p165
        %p262 = pneg %p162
        %p263 = pneg %p191
        %p264 = pneg %p188
        %s265 = sand.u32 %s178, 1
        %s266 = sand.u32 %s178, 1
        %s267 = smul.addr %s266, 128
        %s268 = scalar_lea.vmem [#allocation2], %s267
        %s269 = smul.u32 4, %s18
        %p270 = scmp.lt.s32.totalorder %s269, 7
        %s271 = scalar_select %p270, %s269, 7
        %s272 = smul.addr %s271, 8
        %s273 = scalar_lea.vmem %s0, %s272
        %s274 = smul.u32 4, %s18
        %s275 = smul.u32 4, %s18
        %v277 = vld [vmem:[%s273] sm:$0xff]
        %v278 = vld [vmem:[%s273 + $0x8] sm:$0xff]
        %v279 = vld [vmem:[%s273 + $0x10] sm:$0xff]
        %v280 = vld [vmem:[%s273 + $0x18] sm:$0xff]
        %281 = vst [vmem:[%s268] sm:$0xff] %v277
        %282 = vst [vmem:[%s268 + $0x8] sm:$0xff] %v278
        %283 = vst [vmem:[%s268 + $0x10] sm:$0xff] %v279
        %284 = vst [vmem:[%s268 + $0x18] sm:$0xff] %v280
        %v285 = vlaneseq
        %v286 = vand.u32 %v285, 127
        %v287 = vadd.s32 %v286, 128
        %v288 = vadd.s32 %v286, 256
        %v289 = vadd.s32 %v286, 384
        %vm290 = vcmp.lt.s32.totalorder %v286, 0
        %v291 = vsub.s32 0, %v286
        %v292 = vsel %vm290, %v291, %v286
        %v293 = vshrl.u32 %v292, 5
        %v294 = vand.u32 %v292, 31
        %v295 = vsub.s32 0, %v294
        %v296 = vsel %vm290, %v295, %v294
        %vm297 = vcmp.lt.s32.totalorder %v287, 0
        %v298 = vsub.s32 0, %v287
        %v299 = vsel %vm297, %v298, %v287
        %v300 = vshrl.u32 %v299, 5
        %v301 = vand.u32 %v299, 31
        %v302 = vsub.s32 0, %v301
        %v303 = vsel %vm297, %v302, %v301
        %vm304 = vcmp.lt.s32.totalorder %v288, 0
        %v305 = vsub.s32 0, %v288
        %v306 = vsel %vm304, %v305, %v288
        %v307 = vshrl.u32 %v306, 5
        %v308 = vand.u32 %v306, 31
        %v309 = vsub.s32 0, %v308
        %v310 = vsel %vm304, %v309, %v308
        %vm311 = vcmp.lt.s32.totalorder %v289, 0
        %v312 = vsub.s32 0, %v289
        %v313 = vsel %vm311, %v312, %v289
        %v314 = vshrl.u32 %v313, 5
        %v315 = vand.u32 %v313, 31
        %v316 = vsub.s32 0, %v315
        %v317 = vsel %vm311, %v316, %v315
        %vm318 = vcmp.ne.s32.totalorder %v296, 0
        %vm319 = vcmp.ne.s32.totalorder %v303, 0
        %vm320 = vcmp.ne.s32.totalorder %v310, 0
        %vm321 = vcmp.ne.s32.totalorder %v317, 0
        %vm322 = vcmp.lt.s32.totalorder %v296, 0
        %vm323 = vcmp.lt.s32.totalorder %v303, 0
        %vm324 = vcmp.lt.s32.totalorder %v310, 0
        %vm325 = vcmp.lt.s32.totalorder %v317, 0
        %vm326 = vmand %vm322, %vm318
        %vm327 = vmand %vm323, %vm319
        %vm328 = vmand %vm324, %vm320
        %vm329 = vmand %vm325, %vm321
        %v330 = vadd.s32 %v296, 32
        %v331 = vadd.s32 %v303, 32
        %v332 = vadd.s32 %v310, 32
        %v333 = vadd.s32 %v317, 32
        %v334 = vsel %vm326, %v330, %v296
        %v335 = vsel %vm327, %v331, %v303
        %v336 = vsel %vm328, %v332, %v310
        %v337 = vsel %vm329, %v333, %v317
        %vm338 = vcmp.ge.s32.totalorder %v334, 1
        %vm339 = vcmp.ge.s32.totalorder %v335, 1
        %vm340 = vcmp.ge.s32.totalorder %v336, 1
        %vm341 = vcmp.ge.s32.totalorder %v337, 1
        %vm342 = vcmp.le.s32.totalorder %v334, 30
        %vm343 = vcmp.le.s32.totalorder %v335, 30
        %vm344 = vcmp.le.s32.totalorder %v336, 30
        %vm345 = vcmp.le.s32.totalorder %v337, 30
        %vm346 = vmand %vm338, %vm342
        %vm347 = vmand %vm339, %vm343
        %vm348 = vmand %vm340, %vm344
        %vm349 = vmand %vm341, %vm345
        %v350 = vld [vmem:[%s1] sm:$0xf]
        %v351 = vld [vmem:[%s1 + $0x4] sm:$0xf]
        %v352 = vld [vmem:[%s1 + $0x8] sm:$0xf]
        %v353 = vld [vmem:[%s2] sm:$0xff]
        %v354 = vld [vmem:[%s268] sm:$0xff]
        %v355 = vld [vmem:[%s268 + $0x8] sm:$0xff]
        %v356 = vld [vmem:[%s268 + $0x10] sm:$0xff]
        %v357 = vld [vmem:[%s268 + $0x18] sm:$0xff]
        %v358 = vpack.c.bf16 %v354, %v354
        %v359 = vpack.c.bf16 %v355, %v355
        %v360 = vpack.c.bf16 %v356, %v356
        %v361 = vpack.c.bf16 %v357, %v357
        %v365 = vunpack.c.l.b16 %v350
        %v366 = vunpack.c.l.b16 %v351
        %v367 = vunpack.c.l.b16 %v352
        %v368 = vpack.c.b16 %v366, %v365
        %v369 = vpack.c.b16 %v367, %v367
        %vm370 = vcmask 64512
        %v372 = vsel %vm370, %v368, 0
        %v375 = vsel %vm370, %v369, 0
        %vm377 = vcmask 1043456
        %v379 = vsel %vm377, %v358, 0
        %v382 = vsel %vm377, %v359, 0
        %v385 = vsel %vm377, %v360, 0
        %v388 = vsel %vm377, %v361, 0
        %390 = vmatprep.subr.bf16.mxu0 0
        %391 = vmatpush1.bf16.msra.mxu0 0
        %392 = vmatprep.subr.bf16.mxu0 0
        %393 = vmatpush1.bf16.msra.mxu0 0
        %394 = vmatprep.subr.bf16.mxu0 0
        %395 = vmatpush1.bf16.msra.mxu0 0
        %396 = vmatprep.subr.bf16.mxu0 0
        %397 = vmatpush1.bf16.msra.mxu0 0
        %398 = vmatprep.subr.bf16.mxu0 0
        %399 = vmatpush1.bf16.msra.mxu0 0
        %400 = vmatprep.subr.bf16.mxu0 0
        %401 = vmatpush1.bf16.msra.mxu0 0
        %402 = vmatprep.subr.bf16.mxu0 0
        %403 = vmatpush1.bf16.msra.mxu0 0
        %404 = vmatprep.subr.bf16.mxu0 %v382
        %405 = vmatpush1.bf16.msra.mxu0 %v379
        %406 = vmatprep.subr.bf16.mxu0 0
        %407 = vmatpush2.bf16.msra.mxu0 0
        %408 = vmatprep.subr.bf16.mxu0 0
        %409 = vmatpush2.bf16.msra.mxu0 0
        %410 = vmatprep.subr.bf16.mxu0 0
        %411 = vmatpush2.bf16.msra.mxu0 0
        %412 = vmatprep.subr.bf16.mxu0 0
        %413 = vmatpush2.bf16.msra.mxu0 0
        %414 = vmatprep.subr.bf16.mxu0 0
        %415 = vmatpush2.bf16.msra.mxu0 0
        %416 = vmatprep.subr.bf16.mxu0 0
        %417 = vmatpush2.bf16.msra.mxu0 0
        %418 = vmatprep.subr.bf16.mxu0 0
        %419 = vmatpush2.bf16.msra.mxu0 0
        %420 = vmatprep.subr.bf16.mxu0 0
        %421 = vmatpush2.bf16.msra.mxu0 0
        %422 = vmatprep.mubr.bf16.mxu0 0
        %423 = vmatmul.mubr.bf16.gmra.mxu0 %v372
        %v424 = vpop.f32.mrf.mxu0
        %v425 = vadd.f32 0.0, %v424
        %v426 = vpop.f32.mrf.mxu0
        %v427 = vadd.f32 0.0, %v426
        %v428 = vpop.f32.mrf.mxu0
        %v429 = vadd.f32 0.0, %v428
        %v430 = vpop.f32.mrf.mxu0
        %v431 = vadd.f32 0.0, %v430
        %432 = vmatprep.mubr.bf16.mxu0 0
        %433 = vmatmul.mubr.bf16.gmra.mxu0 %v375
        %v434 = vpop.f32.mrf.mxu0
        %v435 = vadd.f32 0.0, %v434
        %v436 = vpop.f32.mrf.mxu0
        %v437 = vadd.f32 0.0, %v436
        %v438 = vpop.f32.mrf.mxu0
        %v439 = vpop.f32.mrf.mxu0
        %440 = vdwg.mxu0
        %441 = vmatprep.subr.bf16.mxu0 0
        %442 = vmatpush1.bf16.msra.mxu0 0
        %443 = vmatprep.subr.bf16.mxu0 0
        %444 = vmatpush1.bf16.msra.mxu0 0
        %445 = vmatprep.subr.bf16.mxu0 0
        %446 = vmatpush1.bf16.msra.mxu0 0
        %447 = vmatprep.subr.bf16.mxu0 0
        %448 = vmatpush1.bf16.msra.mxu0 0
        %449 = vmatprep.subr.bf16.mxu0 0
        %450 = vmatpush1.bf16.msra.mxu0 0
        %451 = vmatprep.subr.bf16.mxu0 0
        %452 = vmatpush1.bf16.msra.mxu0 0
        %453 = vmatprep.subr.bf16.mxu0 0
        %454 = vmatpush1.bf16.msra.mxu0 0
        %455 = vmatprep.subr.bf16.mxu0 %v388
        %456 = vmatpush1.bf16.msra.mxu0 %v385
        %457 = vmatprep.subr.bf16.mxu0 0
        %458 = vmatpush2.bf16.msra.mxu0 0
        %459 = vmatprep.subr.bf16.mxu0 0
        %460 = vmatpush2.bf16.msra.mxu0 0
        %461 = vmatprep.subr.bf16.mxu0 0
        %462 = vmatpush2.bf16.msra.mxu0 0
        %463 = vmatprep.subr.bf16.mxu0 0
        %464 = vmatpush2.bf16.msra.mxu0 0
        %465 = vmatprep.subr.bf16.mxu0 0
        %466 = vmatpush2.bf16.msra.mxu0 0
        %467 = vmatprep.subr.bf16.mxu0 0
        %468 = vmatpush2.bf16.msra.mxu0 0
        %469 = vmatprep.subr.bf16.mxu0 0
        %470 = vmatpush2.bf16.msra.mxu0 0
        %471 = vmatprep.subr.bf16.mxu0 0
        %472 = vmatpush2.bf16.msra.mxu0 0
        %473 = vmatprep.mubr.bf16.mxu0 0
        %474 = vmatmul.mubr.bf16.gmra.mxu0 %v372
        %v475 = vpop.f32.mrf.mxu0
        %v476 = vadd.f32 0.0, %v475
        %v477 = vpop.f32.mrf.mxu0
        %v478 = vadd.f32 0.0, %v477
        %v479 = vpop.f32.mrf.mxu0
        %v480 = vadd.f32 0.0, %v479
        %v481 = vpop.f32.mrf.mxu0
        %v482 = vadd.f32 0.0, %v481
        %483 = vmatprep.mubr.bf16.mxu0 0
        %484 = vmatmul.mubr.bf16.gmra.mxu0 %v375
        %v485 = vpop.f32.mrf.mxu0
        %v486 = vadd.f32 0.0, %v485
        %v487 = vpop.f32.mrf.mxu0
        %v488 = vadd.f32 0.0, %v487
        %v489 = vpop.f32.mrf.mxu0
        %v490 = vpop.f32.mrf.mxu0
        %491 = vdwg.mxu0
        %492 = vrot.lane.b32.xlu0 %v425, 1
        %v493 = vpop.permute.xlu0 %492
        %494 = vrot.lane.b32.xlu0 %v427, 1
        %v495 = vpop.permute.xlu0 %494
        %496 = vrot.lane.b32.xlu0 %v476, 1
        %v497 = vpop.permute.xlu0 %496
        %498 = vrot.lane.b32.xlu0 %v478, 1
        %v499 = vpop.permute.xlu0 %498
        %vm500 = vcmp.lt.s32.totalorder %v286, 1
        %v501 = vsel %vm500, %v497, %v499
        %v502 = vsel %vm500, %v495, %v497
        %v503 = vsel %vm500, %v493, %v495
        %v504 = vsel %vm500, %v499, %v493
        %v505 = vadd.f32 %v504, %v429
        %v506 = vadd.f32 %v503, %v431
        %v507 = vadd.f32 %v502, %v480
        %v508 = vadd.f32 %v501, %v482
        %509 = vrot.lane.b32.xlu0 %v435, 127
        %v510 = vpop.permute.xlu0 %509
        %511 = vrot.lane.b32.xlu0 %v437, 127
        %v512 = vpop.permute.xlu0 %511
        %513 = vrot.lane.b32.xlu0 %v486, 127
        %v514 = vpop.permute.xlu0 %513
        %515 = vrot.lane.b32.xlu0 %v488, 127
        %v516 = vpop.permute.xlu0 %515
        %vm517 = vcmp.lt.s32.totalorder %v286, 127
        %v518 = vsel %vm517, %v514, %v516
        %v519 = vsel %vm517, %v512, %v514
        %v520 = vsel %vm517, %v510, %v512
        %v521 = vsel %vm517, %v516, %v510
        %v522 = vadd.f32 %v505, %v520
        %v523 = vadd.f32 %v506, %v519
        %v524 = vadd.f32 %v507, %v518
        %v525 = vadd.f32 %v508, %v521
        %527 = vset.pattern.permute.xlu0 0
        %528 = vperm.xlu0 %527, %v353
        %v529 = vpop.permute.xlu0 %528
        %v531 = vadd.f32 %v522, %v529
        %v532 = vadd.f32 %v523, %v529
        %v533 = vadd.f32 %v524, %v529
        %v534 = vadd.f32 %v525, %v529
        %vm535 = vcmp.gt.f32.partialorder %v531, 0.0
        %vm536 = vcmp.gt.f32.partialorder %v532, 0.0
        %vm537 = vcmp.gt.f32.partialorder %v533, 0.0
        %vm538 = vcmp.gt.f32.partialorder %v534, 0.0
        %vm539 = vmand %vm346, %vm535
        %vm540 = vmand %vm347, %vm536
        %vm541 = vmand %vm348, %vm537
        %vm542 = vmand %vm349, %vm538
        %v543 = vsel %vm539, %v531, 0.0
        %v544 = vsel %vm540, %v532, 0.0
        %v545 = vsel %vm541, %v533, 0.0
        %v546 = vsel %vm542, %v534, 0.0
        %547 = vst [vmem:[%s268 + $0x20] sm:$0xff] %v543
        %548 = vst [vmem:[%s268 + $0x28] sm:$0xff] %v544
        %549 = vst [vmem:[%s268 + $0x30] sm:$0xff] %v545
        %550 = vst [vmem:[%s268 + $0x38] sm:$0xff] %v546
        %v551 = vld [vmem:[%s3] sm:$0xf]
        %v552 = vld [vmem:[%s3 + $0x4] sm:$0xf]
        %v553 = vld [vmem:[%s3 + $0x8] sm:$0xf]
        %v554 = vld [vmem:[%s4] sm:$0xff]
        %v555 = vld [vmem:[%s268] sm:$0xff]
        %v556 = vld [vmem:[%s268 + $0x8] sm:$0xff]
        %v557 = vld [vmem:[%s268 + $0x10] sm:$0xff]
        %v558 = vld [vmem:[%s268 + $0x18] sm:$0xff]
        %v559 = vld [vmem:[%s268 + $0x20] sm:$0xff]
        %v560 = vld [vmem:[%s268 + $0x28] sm:$0xff]
        %v561 = vld [vmem:[%s268 + $0x30] sm:$0xff]
        %v562 = vld [vmem:[%s268 + $0x38] sm:$0xff]
        %v563 = vpack.c.bf16 %v559, %v555
        %v564 = vpack.c.bf16 %v560, %v556
        %v565 = vpack.c.bf16 %v561, %v557
        %v566 = vpack.c.bf16 %v562, %v558
        %v570 = vunpack.c.l.b16 %v551
        %v571 = vunpack.c.l.b16 %v552
        %v572 = vunpack.c.l.b16 %v553
        %v573 = vpack.c.b16 %v571, %v570
        %v574 = vpack.c.b16 %v572, %v572
        %vm575 = vcmask 130048
        %v577 = vsel %vm575, %v573, 0
        %v580 = vsel %vm575, %v574, 0
        %582 = vmatprep.subr.bf16.mxu0 0
        %583 = vmatpush1.bf16.msra.mxu0 0
        %584 = vmatprep.subr.bf16.mxu0 0
        %585 = vmatpush1.bf16.msra.mxu0 0
        %586 = vmatprep.subr.bf16.mxu0 0
        %587 = vmatpush1.bf16.msra.mxu0 0
        %588 = vmatprep.subr.bf16.mxu0 0
        %589 = vmatpush1.bf16.msra.mxu0 0
        %590 = vmatprep.subr.bf16.mxu0 0
        %591 = vmatpush1.bf16.msra.mxu0 0
        %592 = vmatprep.subr.bf16.mxu0 0
        %593 = vmatpush1.bf16.msra.mxu0 0
        %594 = vmatprep.subr.bf16.mxu0 0
        %595 = vmatpush1.bf16.msra.mxu0 0
        %596 = vmatprep.subr.bf16.mxu0 %v564
        %597 = vmatpush1.bf16.msra.mxu0 %v563
        %598 = vmatprep.subr.bf16.mxu0 0
        %599 = vmatpush2.bf16.msra.mxu0 0
        %600 = vmatprep.subr.bf16.mxu0 0
        %601 = vmatpush2.bf16.msra.mxu0 0
        %602 = vmatprep.subr.bf16.mxu0 0
        %603 = vmatpush2.bf16.msra.mxu0 0
        %604 = vmatprep.subr.bf16.mxu0 0
        %605 = vmatpush2.bf16.msra.mxu0 0
        %606 = vmatprep.subr.bf16.mxu0 0
        %607 = vmatpush2.bf16.msra.mxu0 0
        %608 = vmatprep.subr.bf16.mxu0 0
        %609 = vmatpush2.bf16.msra.mxu0 0
        %610 = vmatprep.subr.bf16.mxu0 0
        %611 = vmatpush2.bf16.msra.mxu0 0
        %612 = vmatprep.subr.bf16.mxu0 0
        %613 = vmatpush2.bf16.msra.mxu0 0
        %614 = vmatprep.mubr.bf16.mxu0 0
        %615 = vmatmul.mubr.bf16.gmra.mxu0 %v577
        %v616 = vpop.f32.mrf.mxu0
        %v617 = vadd.f32 0.0, %v616
        %v618 = vpop.f32.mrf.mxu0
        %v619 = vadd.f32 0.0, %v618
        %v620 = vpop.f32.mrf.mxu0
        %v621 = vadd.f32 0.0, %v620
        %v622 = vpop.f32.mrf.mxu0
        %v623 = vadd.f32 0.0, %v622
        %624 = vmatprep.mubr.bf16.mxu0 0
        %625 = vmatmul.mubr.bf16.gmra.mxu0 %v580
        %v626 = vpop.f32.mrf.mxu0
        %v627 = vadd.f32 0.0, %v626
        %v628 = vpop.f32.mrf.mxu0
        %v629 = vadd.f32 0.0, %v628
        %v630 = vpop.f32.mrf.mxu0
        %v631 = vpop.f32.mrf.mxu0
        %632 = vdwg.mxu0
        %633 = vmatprep.subr.bf16.mxu0 0
        %634 = vmatpush1.bf16.msra.mxu0 0
        %635 = vmatprep.subr.bf16.mxu0 0
        %636 = vmatpush1.bf16.msra.mxu0 0
        %637 = vmatprep.subr.bf16.mxu0 0
        %638 = vmatpush1.bf16.msra.mxu0 0
        %639 = vmatprep.subr.bf16.mxu0 0
        %640 = vmatpush1.bf16.msra.mxu0 0
        %641 = vmatprep.subr.bf16.mxu0 0
        %642 = vmatpush1.bf16.msra.mxu0 0
        %643 = vmatprep.subr.bf16.mxu0 0
        %644 = vmatpush1.bf16.msra.mxu0 0
        %645 = vmatprep.subr.bf16.mxu0 0
        %646 = vmatpush1.bf16.msra.mxu0 0
        %647 = vmatprep.subr.bf16.mxu0 %v566
        %648 = vmatpush1.bf16.msra.mxu0 %v565
        %649 = vmatprep.subr.bf16.mxu0 0
        %650 = vmatpush2.bf16.msra.mxu0 0
        %651 = vmatprep.subr.bf16.mxu0 0
        %652 = vmatpush2.bf16.msra.mxu0 0
        %653 = vmatprep.subr.bf16.mxu0 0
        %654 = vmatpush2.bf16.msra.mxu0 0
        %655 = vmatprep.subr.bf16.mxu0 0
        %656 = vmatpush2.bf16.msra.mxu0 0
        %657 = vmatprep.subr.bf16.mxu0 0
        %658 = vmatpush2.bf16.msra.mxu0 0
        %659 = vmatprep.subr.bf16.mxu0 0
        %660 = vmatpush2.bf16.msra.mxu0 0
        %661 = vmatprep.subr.bf16.mxu0 0
        %662 = vmatpush2.bf16.msra.mxu0 0
        %663 = vmatprep.subr.bf16.mxu0 0
        %664 = vmatpush2.bf16.msra.mxu0 0
        %665 = vmatprep.mubr.bf16.mxu0 0
        %666 = vmatmul.mubr.bf16.gmra.mxu0 %v577
        %v667 = vpop.f32.mrf.mxu0
        %v668 = vadd.f32 0.0, %v667
        %v669 = vpop.f32.mrf.mxu0
        %v670 = vadd.f32 0.0, %v669
        %v671 = vpop.f32.mrf.mxu0
        %v672 = vadd.f32 0.0, %v671
        %v673 = vpop.f32.mrf.mxu0
        %v674 = vadd.f32 0.0, %v673
        %675 = vmatprep.mubr.bf16.mxu0 0
        %676 = vmatmul.mubr.bf16.gmra.mxu0 %v580
        %v677 = vpop.f32.mrf.mxu0
        %v678 = vadd.f32 0.0, %v677
        %v679 = vpop.f32.mrf.mxu0
        %v680 = vadd.f32 0.0, %v679
        %v681 = vpop.f32.mrf.mxu0
        %v682 = vpop.f32.mrf.mxu0
        %683 = vdwg.mxu0
        %684 = vrot.lane.b32.xlu0 %v617, 1
        %v685 = vpop.permute.xlu0 %684
        %686 = vrot.lane.b32.xlu0 %v619, 1
        %v687 = vpop.permute.xlu0 %686
        %688 = vrot.lane.b32.xlu0 %v668, 1
        %v689 = vpop.permute.xlu0 %688
        %690 = vrot.lane.b32.xlu0 %v670, 1
        %v691 = vpop.permute.xlu0 %690
        %v692 = vsel %vm500, %v689, %v691
        %v693 = vsel %vm500, %v687, %v689
        %v694 = vsel %vm500, %v685, %v687
        %v695 = vsel %vm500, %v691, %v685
        %v696 = vadd.f32 %v695, %v621
        %v697 = vadd.f32 %v694, %v623
        %v698 = vadd.f32 %v693, %v672
        %v699 = vadd.f32 %v692, %v674
        %700 = vrot.lane.b32.xlu0 %v627, 127
        %v701 = vpop.permute.xlu0 %700
        %702 = vrot.lane.b32.xlu0 %v629, 127
        %v703 = vpop.permute.xlu0 %702
        %704 = vrot.lane.b32.xlu0 %v678, 127
        %v705 = vpop.permute.xlu0 %704
        %706 = vrot.lane.b32.xlu0 %v680, 127
        %v707 = vpop.permute.xlu0 %706
        %v708 = vsel %vm517, %v705, %v707
        %v709 = vsel %vm517, %v703, %v705
        %v710 = vsel %vm517, %v701, %v703
        %v711 = vsel %vm517, %v707, %v701
        %v712 = vadd.f32 %v696, %v710
        %v713 = vadd.f32 %v697, %v709
        %v714 = vadd.f32 %v698, %v708
        %v715 = vadd.f32 %v699, %v711
        %717 = vset.pattern.permute.xlu0 0
        %718 = vperm.xlu0 %717, %v554
        %v719 = vpop.permute.xlu0 %718
        %v721 = vadd.f32 %v712, %v719
        %v722 = vadd.f32 %v713, %v719
        %v723 = vadd.f32 %v714, %v719
        %v724 = vadd.f32 %v715, %v719
        %vm725 = vcmp.gt.f32.partialorder %v721, 0.0
        %vm726 = vcmp.gt.f32.partialorder %v722, 0.0
        %vm727 = vcmp.gt.f32.partialorder %v723, 0.0
        %vm728 = vcmp.gt.f32.partialorder %v724, 0.0
        %vm729 = vmand %vm346, %vm725
        %vm730 = vmand %vm347, %vm726
        %vm731 = vmand %vm348, %vm727
        %vm732 = vmand %vm349, %vm728
        %v733 = vsel %vm729, %v721, 0.0
        %v734 = vsel %vm730, %v722, 0.0
        %v735 = vsel %vm731, %v723, 0.0
        %v736 = vsel %vm732, %v724, 0.0
        %737 = vst [vmem:[%s268 + $0x40] sm:$0xff] %v733
        %738 = vst [vmem:[%s268 + $0x48] sm:$0xff] %v734
        %739 = vst [vmem:[%s268 + $0x50] sm:$0xff] %v735
        %740 = vst [vmem:[%s268 + $0x58] sm:$0xff] %v736
        %v741 = vld [vmem:[%s5] sm:$0xf]
        %v742 = vld [vmem:[%s5 + $0x4] sm:$0xf]
        %v743 = vld [vmem:[%s5 + $0x8] sm:$0xf]
        %v744 = vld [vmem:[%s6] sm:$0xff]
        %v745 = vld [vmem:[%s268] sm:$0xff]
        %v746 = vld [vmem:[%s268 + $0x8] sm:$0xff]
        %v747 = vld [vmem:[%s268 + $0x10] sm:$0xff]
        %v748 = vld [vmem:[%s268 + $0x18] sm:$0xff]
        %v749 = vld [vmem:[%s268 + $0x20] sm:$0xff]
        %v750 = vld [vmem:[%s268 + $0x28] sm:$0xff]
        %v751 = vld [vmem:[%s268 + $0x30] sm:$0xff]
        %v752 = vld [vmem:[%s268 + $0x38] sm:$0xff]
        %v753 = vld [vmem:[%s268 + $0x40] sm:$0xff]
        %v754 = vld [vmem:[%s268 + $0x48] sm:$0xff]
        %v755 = vld [vmem:[%s268 + $0x50] sm:$0xff]
        %v756 = vld [vmem:[%s268 + $0x58] sm:$0xff]
        %v757 = vpack.c.bf16 %v749, %v745
        %v758 = vpack.c.bf16 %v750, %v746
        %v759 = vpack.c.bf16 %v751, %v747
        %v760 = vpack.c.bf16 %v752, %v748
        %v761 = vpack.c.bf16 %v753, %v753
        %v762 = vpack.c.bf16 %v754, %v754
        %v763 = vpack.c.bf16 %v755, %v755
        %v764 = vpack.c.bf16 %v756, %v756
        %v768 = vunpack.c.l.b16 %v741
        %v769 = vunpack.c.l.b16 %v742
        %v770 = vunpack.c.l.b16 %v743
        %v771 = vpack.c.b16 %v769, %v768
        %v772 = vpack.c.b16 %v770, %v770
        %vm773 = vcmask 195584
        %v775 = vsel %vm773, %v771, 0
        %v778 = vsel %vm773, %v772, 0
        %v781 = vsel %vm377, %v761, 0
        %v784 = vsel %vm377, %v762, 0
        %v787 = vsel %vm377, %v763, 0
        %v790 = vsel %vm377, %v764, 0
        %792 = vmatprep.subr.bf16.mxu0 0
        %793 = vmatpush1.bf16.msra.mxu0 0
        %794 = vmatprep.subr.bf16.mxu0 0
        %795 = vmatpush1.bf16.msra.mxu0 0
        %796 = vmatprep.subr.bf16.mxu0 0
        %797 = vmatpush1.bf16.msra.mxu0 0
        %798 = vmatprep.subr.bf16.mxu0 0
        %799 = vmatpush1.bf16.msra.mxu0 0
        %800 = vmatprep.subr.bf16.mxu0 0
        %801 = vmatpush1.bf16.msra.mxu0 0
        %802 = vmatprep.subr.bf16.mxu0 0
        %803 = vmatpush1.bf16.msra.mxu0 0
        %804 = vmatprep.subr.bf16.mxu0 %v784
        %805 = vmatpush1.bf16.msra.mxu0 %v781
        %806 = vmatprep.subr.bf16.mxu0 %v758
        %807 = vmatpush1.bf16.msra.mxu0 %v757
        %808 = vmatprep.subr.bf16.mxu0 0
        %809 = vmatpush2.bf16.msra.mxu0 0
        %810 = vmatprep.subr.bf16.mxu0 0
        %811 = vmatpush2.bf16.msra.mxu0 0
        %812 = vmatprep.subr.bf16.mxu0 0
        %813 = vmatpush2.bf16.msra.mxu0 0
        %814 = vmatprep.subr.bf16.mxu0 0
        %815 = vmatpush2.bf16.msra.mxu0 0
        %816 = vmatprep.subr.bf16.mxu0 0
        %817 = vmatpush2.bf16.msra.mxu0 0
        %818 = vmatprep.subr.bf16.mxu0 0
        %819 = vmatpush2.bf16.msra.mxu0 0
        %820 = vmatprep.subr.bf16.mxu0 0
        %821 = vmatpush2.bf16.msra.mxu0 0
        %822 = vmatprep.subr.bf16.mxu0 0
        %823 = vmatpush2.bf16.msra.mxu0 0
        %824 = vmatprep.mubr.bf16.mxu0 0
        %825 = vmatmul.mubr.bf16.gmra.mxu0 %v775
        %v826 = vpop.f32.mrf.mxu0
        %v827 = vadd.f32 0.0, %v826
        %v828 = vpop.f32.mrf.mxu0
        %v829 = vadd.f32 0.0, %v828
        %v830 = vpop.f32.mrf.mxu0
        %v831 = vadd.f32 0.0, %v830
        %v832 = vpop.f32.mrf.mxu0
        %v833 = vadd.f32 0.0, %v832
        %834 = vmatprep.mubr.bf16.mxu0 0
        %835 = vmatmul.mubr.bf16.gmra.mxu0 %v778
        %v836 = vpop.f32.mrf.mxu0
        %v837 = vadd.f32 0.0, %v836
        %v838 = vpop.f32.mrf.mxu0
        %v839 = vadd.f32 0.0, %v838
        %v840 = vpop.f32.mrf.mxu0
        %v841 = vpop.f32.mrf.mxu0
        %842 = vdwg.mxu0
        %843 = vmatprep.subr.bf16.mxu0 0
        %844 = vmatpush1.bf16.msra.mxu0 0
        %845 = vmatprep.subr.bf16.mxu0 0
        %846 = vmatpush1.bf16.msra.mxu0 0
        %847 = vmatprep.subr.bf16.mxu0 0
        %848 = vmatpush1.bf16.msra.mxu0 0
        %849 = vmatprep.subr.bf16.mxu0 0
        %850 = vmatpush1.bf16.msra.mxu0 0
        %851 = vmatprep.subr.bf16.mxu0 0
        %852 = vmatpush1.bf16.msra.mxu0 0
        %853 = vmatprep.subr.bf16.mxu0 0
        %854 = vmatpush1.bf16.msra.mxu0 0
        %855 = vmatprep.subr.bf16.mxu0 %v790
        %856 = vmatpush1.bf16.msra.mxu0 %v787
        %857 = vmatprep.subr.bf16.mxu0 %v760
        %858 = vmatpush1.bf16.msra.mxu0 %v759
        %859 = vmatprep.subr.bf16.mxu0 0
        %860 = vmatpush2.bf16.msra.mxu0 0
        %861 = vmatprep.subr.bf16.mxu0 0
        %862 = vmatpush2.bf16.msra.mxu0 0
        %863 = vmatprep.subr.bf16.mxu0 0
        %864 = vmatpush2.bf16.msra.mxu0 0
        %865 = vmatprep.subr.bf16.mxu0 0
        %866 = vmatpush2.bf16.msra.mxu0 0
        %867 = vmatprep.subr.bf16.mxu0 0
        %868 = vmatpush2.bf16.msra.mxu0 0
        %869 = vmatprep.subr.bf16.mxu0 0
        %870 = vmatpush2.bf16.msra.mxu0 0
        %871 = vmatprep.subr.bf16.mxu0 0
        %872 = vmatpush2.bf16.msra.mxu0 0
        %873 = vmatprep.subr.bf16.mxu0 0
        %874 = vmatpush2.bf16.msra.mxu0 0
        %875 = vmatprep.mubr.bf16.mxu0 0
        %876 = vmatmul.mubr.bf16.gmra.mxu0 %v775
        %v877 = vpop.f32.mrf.mxu0
        %v878 = vadd.f32 0.0, %v877
        %v879 = vpop.f32.mrf.mxu0
        %v880 = vadd.f32 0.0, %v879
        %v881 = vpop.f32.mrf.mxu0
        %v882 = vadd.f32 0.0, %v881
        %v883 = vpop.f32.mrf.mxu0
        %v884 = vadd.f32 0.0, %v883
        %885 = vmatprep.mubr.bf16.mxu0 0
        %886 = vmatmul.mubr.bf16.gmra.mxu0 %v778
        %v887 = vpop.f32.mrf.mxu0
        %v888 = vadd.f32 0.0, %v887
        %v889 = vpop.f32.mrf.mxu0
        %v890 = vadd.f32 0.0, %v889
        %v891 = vpop.f32.mrf.mxu0
        %v892 = vpop.f32.mrf.mxu0
        %893 = vdwg.mxu0
        %894 = vrot.lane.b32.xlu0 %v827, 1
        %v895 = vpop.permute.xlu0 %894
        %896 = vrot.lane.b32.xlu0 %v829, 1
        %v897 = vpop.permute.xlu0 %896
        %898 = vrot.lane.b32.xlu0 %v878, 1
        %v899 = vpop.permute.xlu0 %898
        %900 = vrot.lane.b32.xlu0 %v880, 1
        %v901 = vpop.permute.xlu0 %900
        %v902 = vsel %vm500, %v899, %v901
        %v903 = vsel %vm500, %v897, %v899
        %v904 = vsel %vm500, %v895, %v897
        %v905 = vsel %vm500, %v901, %v895
        %v906 = vadd.f32 %v905, %v831
        %v907 = vadd.f32 %v904, %v833
        %v908 = vadd.f32 %v903, %v882
        %v909 = vadd.f32 %v902, %v884
        %910 = vrot.lane.b32.xlu0 %v837, 127
        %v911 = vpop.permute.xlu0 %910
        %912 = vrot.lane.b32.xlu0 %v839, 127
        %v913 = vpop.permute.xlu0 %912
        %914 = vrot.lane.b32.xlu0 %v888, 127
        %v915 = vpop.permute.xlu0 %914
        %916 = vrot.lane.b32.xlu0 %v890, 127
        %v917 = vpop.permute.xlu0 %916
        %v918 = vsel %vm517, %v915, %v917
        %v919 = vsel %vm517, %v913, %v915
        %v920 = vsel %vm517, %v911, %v913
        %v921 = vsel %vm517, %v917, %v911
        %v922 = vadd.f32 %v906, %v920
        %v923 = vadd.f32 %v907, %v919
        %v924 = vadd.f32 %v908, %v918
        %v925 = vadd.f32 %v909, %v921
        %927 = vset.pattern.permute.xlu0 0
        %928 = vperm.xlu0 %927, %v744
        %v929 = vpop.permute.xlu0 %928
        %v931 = vadd.f32 %v922, %v929
        %v932 = vadd.f32 %v923, %v929
        %v933 = vadd.f32 %v924, %v929
        %v934 = vadd.f32 %v925, %v929
        %vm935 = vcmp.gt.f32.partialorder %v931, 0.0
        %vm936 = vcmp.gt.f32.partialorder %v932, 0.0
        %vm937 = vcmp.gt.f32.partialorder %v933, 0.0
        %vm938 = vcmp.gt.f32.partialorder %v934, 0.0
        %vm939 = vmand %vm346, %vm935
        %vm940 = vmand %vm347, %vm936
        %vm941 = vmand %vm348, %vm937
        %vm942 = vmand %vm349, %vm938
        %v943 = vsel %vm939, %v931, 0.0
        %v944 = vsel %vm940, %v932, 0.0
        %v945 = vsel %vm941, %v933, 0.0
        %v946 = vsel %vm942, %v934, 0.0
        %947 = vst [vmem:[%s268 + $0x60] sm:$0xff] %v943
        %948 = vst [vmem:[%s268 + $0x68] sm:$0xff] %v944
        %949 = vst [vmem:[%s268 + $0x70] sm:$0xff] %v945
        %950 = vst [vmem:[%s268 + $0x78] sm:$0xff] %v946
        %s951 = sand.u32 %s178, 1
        %s952 = sand.u32 %s178, 1
        %s953 = smul.addr %s952, 128
        %s954 = scalar_lea.vmem [#allocation2], %s953
        // Predicated region
        $region49: #{dense_block.1} parent=47 // pred_check
          %p955 = pneg %p188
        $region50: #{dense_block.1} parent=47 // pred_check_branch
          %957 = sbr.rel (%p955) target = $region52
        $region51: #{dense_block.1} parent=47 // pred_region
          %s958 = smul.u32 4, %s18
          %s959 = smul.addr %s958, 8
          %s960 = scalar_lea.vmem %s7, %s959
          // Predicated region
          $region53: #{dense_block.1} parent=51 // pred_check
            _
          $region54: #{dense_block.1} parent=51 // pred_check_branch
            %962 = sbr.rel (0) target = $region56
          $region55: #{dense_block.1} parent=51 // pred_region
            // Predicated region
            $region57: #{dense_block.1} parent=55 // pred_check
              _
            $region58: #{dense_block.1} parent=55 // pred_check_branch
              %964 = sbr.rel (0) target = $region60
            $region59: #{dense_block.1} parent=55 // pred_region
              loop: start=0, step=1, limit=1
              $region61: #{dense_block.1} parent=59 // loop_pre_header
                _
              $region62: #{dense_block.1} parent=59 // loop_header
                %s966 = sphi 0, %s970
                %p967 = scmp.ge.s32.totalorder %s966, 1
                %s971 = sphi %s954, %s954
                %s972 = sphi %s960, %s960
              $region63: #{dense_block.1} parent=59 // loop_header_branch
                %969 = sbr.rel (%p967) target = $region67
              $region64: #{dense_block.1} parent=59 // loop_body
                %v973 = vld [vmem:[%s971] sm:$0xff]
                %974 = vst [vmem:[%s972] sm:$0xff] %v973
                %v975 = vld [vmem:[%s971 + $0x8] sm:$0xff]
                %976 = vst [vmem:[%s972 + $0x8] sm:$0xff] %v975
                %v977 = vld [vmem:[%s971 + $0x10] sm:$0xff]
                %978 = vst [vmem:[%s972 + $0x10] sm:$0xff] %v977
                %v979 = vld [vmem:[%s971 + $0x18] sm:$0xff]
                %980 = vst [vmem:[%s972 + $0x18] sm:$0xff] %v979
                %v981 = vld [vmem:[%s971 + $0x20] sm:$0xff]
                %982 = vst [vmem:[%s972 + $0x40] sm:$0xff] %v981
                %v983 = vld [vmem:[%s971 + $0x28] sm:$0xff]
                %984 = vst [vmem:[%s972 + $0x48] sm:$0xff] %v983
                %v985 = vld [vmem:[%s971 + $0x30] sm:$0xff]
                %986 = vst [vmem:[%s972 + $0x50] sm:$0xff] %v985
                %v987 = vld [vmem:[%s971 + $0x38] sm:$0xff]
                %988 = vst [vmem:[%s972 + $0x58] sm:$0xff] %v987
                %v989 = vld [vmem:[%s971 + $0x40] sm:$0xff]
                %990 = vst [vmem:[%s972 + $0x80] sm:$0xff] %v989
                %v991 = vld [vmem:[%s971 + $0x48] sm:$0xff]
                %992 = vst [vmem:[%s972 + $0x88] sm:$0xff] %v991
                %v993 = vld [vmem:[%s971 + $0x50] sm:$0xff]
                %994 = vst [vmem:[%s972 + $0x90] sm:$0xff] %v993
                %v995 = vld [vmem:[%s971 + $0x58] sm:$0xff]
                %996 = vst [vmem:[%s972 + $0x98] sm:$0xff] %v995
                %v997 = vld [vmem:[%s971 + $0x60] sm:$0xff]
                %998 = vst [vmem:[%s972 + $0xc0] sm:$0xff] %v997
                %v999 = vld [vmem:[%s971 + $0x68] sm:$0xff]
                %1000 = vst [vmem:[%s972 + $0xc8] sm:$0xff] %v999
                %v1001 = vld [vmem:[%s971 + $0x70] sm:$0xff]
                %1002 = vst [vmem:[%s972 + $0xd0] sm:$0xff] %v1001
                %v1003 = vld [vmem:[%s971 + $0x78] sm:$0xff]
                %1004 = vst [vmem:[%s972 + $0xd8] sm:$0xff] %v1003
              $region65: #{dense_block.1} parent=59 // loop_footer
                %s970 = sadd.s32 1, %s966
              $region66: #{dense_block.1} parent=59 // loop_footer_branch
                %965 = sbr.rel target = $region62
              $region67: #{dense_block.1} parent=59 // loop_exit
                _
            $region60: #{dense_block.1} parent=55 // pred_fallthru
              _
            // Predicated region
            $region68: #{dense_block.1} parent=55 // pred_check
              _
            $region69: #{dense_block.1} parent=55 // pred_check_branch
              %1006 = sbr.rel target = $region71
            $region70: #{dense_block.1} parent=55 // pred_region
              _
            $region71: #{dense_block.1} parent=55 // pred_fallthru
              _
          $region56: #{dense_block.1} parent=51 // pred_fallthru
            _
          %1007 = vnop
        $region52: #{dense_block.1} parent=47 // pred_fallthru
          _
      $region48: #{dense_block.1} parent=5 // pred_fallthru
        _
      %p1008 = scmp.le.s32.totalorder 2, %s13
      // Predicated region
      $region72: #{dense_block.1} parent=5 // pred_check
        %p1009 = pneg %p1008
      $region73: #{dense_block.1} parent=5 // pred_check_branch
        %1011 = sbr.rel (%p1009) target = $region75
      $region74: #{dense_block.1} parent=5 // pred_region
        %s1012 = ssub.s32 %s13, 2
        // Predicated region
        $region76: #{dense_block.1} parent=74 // pred_check
          %p1013 = pneg %p194
        $region77: #{dense_block.1} parent=74 // pred_check_branch
          %1015 = sbr.rel (%p1013) target = $region79
        $region78: #{dense_block.1} parent=74 // pred_region
          %s1016 = sand.u32 %s179, 1
          %s1017 = sand.u32 %s179, 1
          %s1018 = smul.addr %s1017, 128
          %s1019 = scalar_lea.vmem [#allocation2], %s1018
        $region79: #{dense_block.1} parent=74 // pred_fallthru
          _
      $region75: #{dense_block.1} parent=5 // pred_fallthru
        _
    $region6: #{dense_block.1} parent=1 // loop_footer
      %s17 = sadd.s32 1, %s13
    $region7: #{dense_block.1} parent=1 // loop_footer_branch
      %12 = sbr.rel target = $region3
    $region8: #{dense_block.1} parent=1 // loop_exit
      _

</llo_original>
